<compile_context>
chip_gen: v7x
topology: tpu7x:2x2x1
jax: 0.10.0
libtpu: 0.0.40
codegen_flags: <defaults>
</compile_context>

<pallas_src>
import functools

import jax
import jax.numpy as jnp
from jax.experimental import pallas as pl
from jax.experimental.pallas import tpu as pltpu


def _round_up(x, m):
    return ((x + m - 1) // m) * m


def _mlp_decoder_kernel(lat_ref, act_ref, w1l_ref, w1a_ref, b1_ref,
                        w2_ref, b2_ref, w3_ref, b3_ref, o_ref):
    """One row tile: relu(lat@W1l + act@W1a + b1) -> relu(.@W2 + b2) -> .@W3 + b3."""
    cdt = w2_ref.dtype  # MXU operand dtype (bf16 fast path or f32)

    h1 = jnp.dot(lat_ref[...], w1l_ref[...], preferred_element_type=jnp.float32)
    h1 = h1 + jnp.dot(act_ref[...], w1a_ref[...],
                      preferred_element_type=jnp.float32)
    h1 = jnp.maximum(h1 + b1_ref[...], 0.0)            # bias + ReLU in f32

    h2 = jnp.dot(h1.astype(cdt), w2_ref[...], preferred_element_type=jnp.float32)
    h2 = jnp.maximum(h2 + b2_ref[...], 0.0)

    out = jnp.dot(h2.astype(cdt), w3_ref[...], preferred_element_type=jnp.float32)
    out = out + b3_ref[...]
    o_ref[...] = out.astype(o_ref.dtype)


@functools.lru_cache(maxsize=None)
def _single_buffer_supported():
    """True if pipeline_mode=pl.Buffered(1) lowers on this backend (probed once)."""
    if not hasattr(pl, "Buffered"):
        return False
    try:
        with jax.ensure_compile_time_eval():
            def _k(x_ref, o_ref):
                o_ref[...] = x_ref[...] + 1.0
            y = pl.pallas_call(
                _k,
                out_shape=jax.ShapeDtypeStruct((8, 128), jnp.float32),
                grid=(1,),
                in_specs=[pl.BlockSpec((8, 128), lambda i: (0, 0),
                                       pipeline_mode=pl.Buffered(1))],
                out_specs=pl.BlockSpec((8, 128), lambda i: (0, 0)),
            )(jnp.zeros((8, 128), jnp.float32))
            jax.block_until_ready(y)
        return True
    except Exception:
        return False


def _vmem_limit_bytes():
    """Scoped-VMEM limit: 3/4 of physical (≈96 MiB on 128 MiB parts, 48 MiB on v7x)."""
    phys = 0
    try:
        phys = int(getattr(pltpu.get_tpu_info(), "vmem_capacity_bytes", 0) or 0)
    except Exception:
        phys = 0
    if phys <= 0:
        phys = 64 * 1024 * 1024  # safe fallback for any generation
    return (phys * 3) // 4


def _pick_row_tile(M, d_lat, d_act, hid, obs, in_isz, out_isz, budget, weight_bufs):
    """Largest row tile whose VMEM working set fits the budget, grid-friendly."""
    # Weights/biases (single- or double-buffered depending on backend support).
    w_bytes = weight_bufs * (in_isz * ((d_lat + d_act) * hid + hid * hid + hid * obs)
                             + 4 * (2 * hid + obs))
    # Double-buffered input/output row tiles + f32 h1/h2 temporaries.
    per_row = 2 * (in_isz * (d_lat + d_act) + out_isz * obs) + 4 * 2 * hid
    tm = 128
    for cand in (256, 512, 1024, 2048, 4096):
        if w_bytes + cand * per_row <= budget:
            tm = cand
    # >= 4 grid steps when M allows: keeps the block pipeline overlapped per
    # core and gives v7x (2 TensorCores) >= 2 steps per core under
    # dimension_semantics=("parallel",).
    tm = min(tm, max(128, _round_up(pl.cdiv(M, 4), 128)))
    if tm >= M:
        tm = M  # single block; block dims == full array dims is always legal
    return tm


def vector_decoder_pallas(latents, actions, params, *, num_actions,
                          row_tile=None, compute_dtype=None):
    """
    latents: [B, S, latent_dim] float
    actions: [B, S, action_dim] (one-hot / float) or [B, S] (discrete int)
    params : dict with w1,b1,w2,b2,w3,b3 (w_i stored [D_in, D_out], b_i [D_out])
    returns: [B, S, obs_dim] in latents.dtype
    """
    out_dtype = latents.dtype
    if compute_dtype is None:
        # bf16 MXU fast path for f32 inputs; accumulation stays f32 in-kernel.
        compute_dtype = jnp.bfloat16 if out_dtype == jnp.float32 else out_dtype

    if actions.ndim == 2:
        # TODO(synk): the discrete path could gather rows of W1_act in-kernel
        # (one-hot matmul == row gather); kept in JAX since action_dim is tiny.
        actions = jax.nn.one_hot(actions, num_actions, dtype=compute_dtype)
    actions = actions.astype(compute_dtype)
    lat = latents.astype(compute_dtype)

    B, S, d_lat = lat.shape
    d_act = actions.shape[-1]
    M = B * S
    in_isz = jnp.dtype(compute_dtype).itemsize
    out_isz = jnp.dtype(out_dtype).itemsize

    w1, w2, w3 = params["w1"], params["w2"], params["w3"]
    hid = w1.shape[1]
    obs = w3.shape[1]
    hid_p = _round_up(hid, 128)

    # Split W1 so latents/actions stream straight from HBM (no concat array).
    # Pad only the hidden dim (exact: padded units are relu(0)=0 feeding zero
    # weight rows). obs stays unpadded -> the kernel writes exactly M*obs.
    w1_lat = jnp.pad(w1[:d_lat], ((0, 0), (0, hid_p - hid))).astype(compute_dtype)
    w1_act = jnp.pad(w1[d_lat:d_lat + d_act],
                     ((0, 0), (0, hid_p - hid))).astype(compute_dtype)
    w2_p = jnp.pad(w2, ((0, hid_p - hid), (0, hid_p - hid))).astype(compute_dtype)
    w3_p = jnp.pad(w3, ((0, hid_p - hid), (0, 0))).astype(compute_dtype)
    b1_p = jnp.pad(params["b1"], (0, hid_p - hid)).astype(jnp.float32).reshape(1, hid_p)
    b2_p = jnp.pad(params["b2"], (0, hid_p - hid)).astype(jnp.float32).reshape(1, hid_p)
    b3_p = params["b3"].astype(jnp.float32).reshape(1, obs)

    vmem_limit = _vmem_limit_bytes()
    single_buf = _single_buffer_supported()
    if row_tile is None:
        tm = _pick_row_tile(M, d_lat, d_act, hid_p, obs, in_isz, out_isz,
                            vmem_limit - 4 * 1024 * 1024,
                            1 if single_buf else 2)
    else:
        tm = row_tile

    lat2 = lat.reshape(M, d_lat)       # contiguous reshape: no copy
    act2 = actions.reshape(M, d_act)

    grid = (pl.cdiv(M, tm),)           # partial last block: store is masked
    rows = lambda i: (i, 0)
    const = lambda i: (0, 0)

    def wspec(shape):
        if single_buf:
            return pl.BlockSpec(shape, const, pipeline_mode=pl.Buffered(1))
        return pl.BlockSpec(shape, const)

    flops = 2 * M * ((d_lat + d_act) * hid_p + hid_p * hid_p + hid_p * obs)
    bytes_accessed = (in_isz * M * (d_lat + d_act) + out_isz * M * obs
                      + in_isz * ((d_lat + d_act) * hid_p + hid_p * hid_p
                                  + hid_p * obs)
                      + 4 * (2 * hid_p + obs))

    out = pl.pallas_call(
        _mlp_decoder_kernel,
        out_shape=jax.ShapeDtypeStruct((M, obs), out_dtype),
        grid_spec=pltpu.PrefetchScalarGridSpec(
            num_scalar_prefetch=0,
            grid=grid,
            in_specs=[
                pl.BlockSpec((tm, d_lat), rows),
                pl.BlockSpec((tm, d_act), rows),
                wspec((d_lat, hid_p)),
                wspec((d_act, hid_p)),
                wspec((1, hid_p)),
                wspec((hid_p, hid_p)),
                wspec((1, hid_p)),
                wspec((hid_p, obs)),
                wspec((1, obs)),
            ],
            out_specs=pl.BlockSpec((tm, obs), rows),
        ),
        compiler_params=pltpu.CompilerParams(
            dimension_semantics=("parallel",),
            vmem_limit_bytes=vmem_limit),
        cost_estimate=pl.CostEstimate(flops=flops, transcendentals=0,
                                      bytes_accessed=bytes_accessed),
    )(lat2, act2, w1_lat, w1_act, b1_p, w2_p, b2_p, w3_p, b3_p)

    return out.reshape(B, S, obs)


def init_vector_decoder_params(key, latent_dim, action_dim, obs_dim,
                               hidden_dim=256, dtype=jnp.float32):
    """Deterministic init matching nn.Linear shapes (weights stored [in, out])."""
    input_dim = latent_dim + action_dim
    keys = jax.random.split(key, 6)

    def linear(kw, kb, fan_in, fan_out):
        bound = 1.0 / (fan_in ** 0.5)
        w = jax.random.uniform(kw, (fan_in, fan_out), dtype, -bound, bound)
        b = jax.random.uniform(kb, (fan_out,), dtype, -bound, bound)
        return w, b

    w1, b1 = linear(keys[0], keys[1], input_dim, hidden_dim)
    w2, b2 = linear(keys[2], keys[3], hidden_dim, hidden_dim)
    w3, b3 = linear(keys[4], keys[5], hidden_dim, obs_dim)
    return {"w1": w1, "b1": b1, "w2": w2, "b2": b2, "w3": w3, "b3": b3}


def _reference_forward(latents, actions, params, num_actions):
    """Pure-JAX reference mirroring the PyTorch forward (full f32 precision)."""
    if actions.ndim == 2:
        actions = jax.nn.one_hot(actions, num_actions, dtype=latents.dtype)
    x = jnp.concatenate([latents, actions.astype(latents.dtype)], axis=-1)
    with jax.default_matmul_precision("float32"):
        h = jax.nn.relu(x @ params["w1"] + params["b1"])
        h = jax.nn.relu(h @ params["w2"] + params["b2"])
        return h @ params["w3"] + params["b3"]


if __name__ == "__main__":
    # Small shapes consistent with the module's forward.
    batch, seq = 2, 8
    latent_dim, action_dim, obs_dim, hidden_dim = 16, 4, 16, 32

    key = jax.random.PRNGKey(0)
    k_lat, k_act, k_param = jax.random.split(key, 3)

    latents = jax.random.normal(k_lat, (batch, seq, latent_dim), jnp.float32)
    # Discrete actions path ([B, S] ints) -> one-hot inside the wrapper.
    actions = jax.random.randint(k_act, (batch, seq), 0, action_dim)

    params = init_vector_decoder_params(
        k_param, latent_dim, action_dim, obs_dim, hidden_dim)

    ref = _reference_forward(latents, actions, params, action_dim)

    # Default fast path: bf16 MXU operands, f32 accumulation.
    fwd = jax.jit(functools.partial(vector_decoder_pallas,
                                    num_actions=action_dim))
    out = jax.block_until_ready(fwd(latents, actions, params))
    assert out.shape == (batch, seq, obs_dim)
    assert out.dtype == latents.dtype
    assert jnp.allclose(out, ref, atol=5e-2, rtol=5e-2), "bf16-path mismatch"

    # Exact f32 operand path.
    fwd32 = jax.jit(functools.partial(vector_decoder_pallas,
                                      num_actions=action_dim,
                                      compute_dtype=jnp.float32))
    out32 = jax.block_until_ready(fwd32(latents, actions, params))
    assert jnp.allclose(out32, ref, atol=1e-3, rtol=1e-3), "f32-path mismatch"

    print("KERNEL_OK")
</pallas_src>

<mosaic_0001>
module attributes {stable_mosaic.version = 11 : i64} {
  func.func @_mlp_decoder_kernel(%arg0: i32, %arg1: memref<16x16xbf16, #tpu.memory_space<vmem>>, %arg2: memref<16x4xbf16, #tpu.memory_space<vmem>>, %arg3: memref<16x128xbf16, #tpu.memory_space<vmem>>, %arg4: memref<4x128xbf16, #tpu.memory_space<vmem>>, %arg5: memref<1x128xf32, #tpu.memory_space<vmem>>, %arg6: memref<128x128xbf16, #tpu.memory_space<vmem>>, %arg7: memref<1x128xf32, #tpu.memory_space<vmem>>, %arg8: memref<128x16xbf16, #tpu.memory_space<vmem>>, %arg9: memref<1x16xf32, #tpu.memory_space<vmem>>, %arg10: memref<16x16xf32, #tpu.memory_space<vmem>>) attributes {dimension_semantics = [#tpu.dimension_semantics<parallel>], iteration_bounds = array<i64: 1>, scalar_prefetch = 0 : i64, scratch_operands = 0 : i64, tpu.core_type = #tpu.core_type<tc>, window_params = [{transform_indices = @transform_0, window_bounds = array<i64: 16, 16>}, {transform_indices = @transform_1, window_bounds = array<i64: 16, 4>}, {pipeline_mode = #tpu.pipeline_mode<synchronous>, transform_indices = @transform_2, window_bounds = array<i64: 16, 128>}, {pipeline_mode = #tpu.pipeline_mode<synchronous>, transform_indices = @transform_3, window_bounds = array<i64: 4, 128>}, {pipeline_mode = #tpu.pipeline_mode<synchronous>, transform_indices = @transform_4, window_bounds = array<i64: 1, 128>}, {pipeline_mode = #tpu.pipeline_mode<synchronous>, transform_indices = @transform_5, window_bounds = array<i64: 128, 128>}, {pipeline_mode = #tpu.pipeline_mode<synchronous>, transform_indices = @transform_6, window_bounds = array<i64: 1, 128>}, {pipeline_mode = #tpu.pipeline_mode<synchronous>, transform_indices = @transform_7, window_bounds = array<i64: 128, 16>}, {pipeline_mode = #tpu.pipeline_mode<synchronous>, transform_indices = @transform_8, window_bounds = array<i64: 1, 16>}, {transform_indices = @transform_9, window_bounds = array<i64: 16, 16>}]} {
    %c0 = arith.constant 0 : index
    %c0_0 = arith.constant 0 : index
    %0 = vector.load %arg1[%c0, %c0_0] : memref<16x16xbf16, #tpu.memory_space<vmem>>, vector<16x16xbf16>
    %c0_1 = arith.constant 0 : index
    %c0_2 = arith.constant 0 : index
    %1 = vector.load %arg3[%c0_1, %c0_2] : memref<16x128xbf16, #tpu.memory_space<vmem>>, vector<16x128xbf16>
    %cst = arith.constant dense<0.000000e+00> : vector<16x128xf32>
    %2 = tpu.matmul %0, %1, %cst {dimension_numbers = #tpu.dot_dimension_numbers<[1], [0], [0], [1], [0, 0, 1, 1], [], []>} : vector<16x16xbf16>, vector<16x128xbf16>, vector<16x128xf32> -> vector<16x128xf32>
    %c0_3 = arith.constant 0 : index
    %c0_4 = arith.constant 0 : index
    %3 = vector.load %arg2[%c0_3, %c0_4] : memref<16x4xbf16, #tpu.memory_space<vmem>>, vector<16x4xbf16>
    %c0_5 = arith.constant 0 : index
    %c0_6 = arith.constant 0 : index
    %4 = vector.load %arg4[%c0_5, %c0_6] : memref<4x128xbf16, #tpu.memory_space<vmem>>, vector<4x128xbf16>
    %cst_7 = arith.constant dense<0.000000e+00> : vector<16x128xf32>
    %5 = tpu.matmul %3, %4, %cst_7 {dimension_numbers = #tpu.dot_dimension_numbers<[1], [0], [0], [1], [0, 0, 1, 1], [], []>} : vector<16x4xbf16>, vector<4x128xbf16>, vector<16x128xf32> -> vector<16x128xf32>
    %6 = arith.addf %2, %5 : vector<16x128xf32>
    %c0_8 = arith.constant 0 : index
    %c0_9 = arith.constant 0 : index
    %7 = vector.load %arg5[%c0_8, %c0_9] : memref<1x128xf32, #tpu.memory_space<vmem>>, vector<1x128xf32>
    %8 = vector.broadcast %7 : vector<1x128xf32> to vector<16x128xf32>
    %9 = arith.addf %6, %8 : vector<16x128xf32>
    %cst_10 = arith.constant 0.000000e+00 : f32
    %10 = vector.broadcast %cst_10 : f32 to vector<16x128xf32>
    %11 = arith.maximumf %9, %10 : vector<16x128xf32>
    %12 = arith.truncf %11 : vector<16x128xf32> to vector<16x128xbf16>
    %c0_11 = arith.constant 0 : index
    %c0_12 = arith.constant 0 : index
    %13 = vector.load %arg6[%c0_11, %c0_12] : memref<128x128xbf16, #tpu.memory_space<vmem>>, vector<128x128xbf16>
    %cst_13 = arith.constant dense<0.000000e+00> : vector<16x128xf32>
    %14 = tpu.matmul %12, %13, %cst_13 {dimension_numbers = #tpu.dot_dimension_numbers<[1], [0], [0], [1], [0, 0, 1, 1], [], []>} : vector<16x128xbf16>, vector<128x128xbf16>, vector<16x128xf32> -> vector<16x128xf32>
    %c0_14 = arith.constant 0 : index
    %c0_15 = arith.constant 0 : index
    %15 = vector.load %arg7[%c0_14, %c0_15] : memref<1x128xf32, #tpu.memory_space<vmem>>, vector<1x128xf32>
    %16 = vector.broadcast %15 : vector<1x128xf32> to vector<16x128xf32>
    %17 = arith.addf %14, %16 : vector<16x128xf32>
    %cst_16 = arith.constant 0.000000e+00 : f32
    %18 = vector.broadcast %cst_16 : f32 to vector<16x128xf32>
    %19 = arith.maximumf %17, %18 : vector<16x128xf32>
    %20 = arith.truncf %19 : vector<16x128xf32> to vector<16x128xbf16>
    %c0_17 = arith.constant 0 : index
    %c0_18 = arith.constant 0 : index
    %21 = vector.load %arg8[%c0_17, %c0_18] : memref<128x16xbf16, #tpu.memory_space<vmem>>, vector<128x16xbf16>
    %cst_19 = arith.constant dense<0.000000e+00> : vector<16x16xf32>
    %22 = tpu.matmul %20, %21, %cst_19 {dimension_numbers = #tpu.dot_dimension_numbers<[1], [0], [0], [1], [0, 0, 1, 1], [], []>} : vector<16x128xbf16>, vector<128x16xbf16>, vector<16x16xf32> -> vector<16x16xf32>
    %c0_20 = arith.constant 0 : index
    %c0_21 = arith.constant 0 : index
    %23 = vector.load %arg9[%c0_20, %c0_21] : memref<1x16xf32, #tpu.memory_space<vmem>>, vector<1x16xf32>
    %24 = vector.broadcast %23 : vector<1x16xf32> to vector<16x16xf32>
    %25 = arith.addf %22, %24 : vector<16x16xf32>
    %c0_22 = arith.constant 0 : index
    %c0_23 = arith.constant 0 : index
    %26 = vector.load %arg10[%c0_22, %c0_23] : memref<16x16xf32, #tpu.memory_space<vmem>>, vector<16x16xf32>
    tpu.vector_store %arg10[%c0_22, %c0_23], %25 {strides = array<i32>} : memref<16x16xf32, #tpu.memory_space<vmem>>, vector<16x16xf32>,
    return
  }
  func.func @transform_0(%arg0: i32) -> (i32, i32) {
    %c0_i32 = arith.constant 0 : i32
    %c0_i32_0 = arith.constant 0 : i32
    return %arg0, %c0_i32 : i32, i32
  }
  func.func @transform_1(%arg0: i32) -> (i32, i32) {
    %c0_i32 = arith.constant 0 : i32
    %c0_i32_0 = arith.constant 0 : i32
    return %arg0, %c0_i32 : i32, i32
  }
  func.func @transform_2(%arg0: i32) -> (i32, i32) {
    %c0_i32 = arith.constant 0 : i32
    %c0_i32_0 = arith.constant 0 : i32
    %c0_i32_1 = arith.constant 0 : i32
    return %c0_i32, %c0_i32_0 : i32, i32
  }
  func.func @transform_3(%arg0: i32) -> (i32, i32) {
    %c0_i32 = arith.constant 0 : i32
    %c0_i32_0 = arith.constant 0 : i32
    %c0_i32_1 = arith.constant 0 : i32
    return %c0_i32, %c0_i32_0 : i32, i32
  }
  func.func @transform_4(%arg0: i32) -> (i32, i32) {
    %c0_i32 = arith.constant 0 : i32
    %c0_i32_0 = arith.constant 0 : i32
    %c0_i32_1 = arith.constant 0 : i32
    return %c0_i32, %c0_i32_0 : i32, i32
  }
  func.func @transform_5(%arg0: i32) -> (i32, i32) {
    %c0_i32 = arith.constant 0 : i32
    %c0_i32_0 = arith.constant 0 : i32
    %c0_i32_1 = arith.constant 0 : i32
    return %c0_i32, %c0_i32_0 : i32, i32
  }
  func.func @transform_6(%arg0: i32) -> (i32, i32) {
    %c0_i32 = arith.constant 0 : i32
    %c0_i32_0 = arith.constant 0 : i32
    %c0_i32_1 = arith.constant 0 : i32
    return %c0_i32, %c0_i32_0 : i32, i32
  }
  func.func @transform_7(%arg0: i32) -> (i32, i32) {
    %c0_i32 = arith.constant 0 : i32
    %c0_i32_0 = arith.constant 0 : i32
    %c0_i32_1 = arith.constant 0 : i32
    return %c0_i32, %c0_i32_0 : i32, i32
  }
  func.func @transform_8(%arg0: i32) -> (i32, i32) {
    %c0_i32 = arith.constant 0 : i32
    %c0_i32_0 = arith.constant 0 : i32
    %c0_i32_1 = arith.constant 0 : i32
    return %c0_i32, %c0_i32_0 : i32, i32
  }
  func.func @transform_9(%arg0: i32) -> (i32, i32) {
    %c0_i32 = arith.constant 0 : i32
    %c0_i32_0 = arith.constant 0 : i32
    return %arg0, %c0_i32 : i32, i32
  }
}

</mosaic_0001>

<llo_original>
// kernel: vector_decoder_pallas.1
$region0: #{vector_decoder_pallas.1}
  #allocation0 [shape = 'u32[]', space=smem, size = 0x4, offset = 0x4, fixed_abs, tag = 'smem constant byte address 0x4 - core index']
  #allocation1 [shape = 'u32[144,128]{1,0:T(1,128)}', space=vmem, size = 0x12000, scoped, tag = 'internal scratch']
  %s0 = inlined_call_operand.vmem [shape: bf16[16,16], index: 0, kind: input, shape index: {}]
  %s1 = inlined_call_operand.vmem [shape: bf16[16,4], index: 1, kind: input, shape index: {}]
  %s2 = inlined_call_operand.vmem [shape: bf16[16,128], index: 2, kind: input, shape index: {}]
  %s3 = inlined_call_operand.vmem [shape: bf16[4,128], index: 3, kind: input, shape index: {}]
  %s4 = inlined_call_operand.vmem [shape: f32[1,128], index: 4, kind: input, shape index: {}]
  %s5 = inlined_call_operand.vmem [shape: bf16[128,128], index: 5, kind: input, shape index: {}]
  %s6 = inlined_call_operand.vmem [shape: f32[1,128], index: 6, kind: input, shape index: {}]
  %s7 = inlined_call_operand.vmem [shape: bf16[128,16], index: 7, kind: input, shape index: {}]
  %s8 = inlined_call_operand.vmem [shape: f32[1,16], index: 8, kind: input, shape index: {}]
  %s9 = inlined_call_operand.hbm [shape: f32[16,16], index: 9, kind: output, shape index: {}]
  %s10 = sld [smem:[#allocation0]]
  $region46: #{vector_decoder_pallas.1} parent=0
    _
  %s12 = ssub.s32 1, %s10
  %s13 = scalar_select 0, %s12, %s10
  $region1: #{vector_decoder_pallas.1} parent=0
    #allocation2 [shape = 'u8[8192]{0}', space=vmem, size = 0x2000, scoped, tag = 'output window, operand 0, single buffered']
    #allocation3 [shape = 's32[1]{0}', space=sflag, size = 0x4, scoped, tag = 'scoped memory for vector_decoder_pallas.1']
    %14 = vsyncpa [#allocation3], 0
    // Predicated region
    $region2: #{vector_decoder_pallas.1} parent=1 // pred_check
      _
    $region3: #{vector_decoder_pallas.1} parent=1 // pred_check_branch
      %16 = sbr.rel (0) target = $region5
    $region4: #{vector_decoder_pallas.1} parent=1 // pred_region
      _
    $region5: #{vector_decoder_pallas.1} parent=1 // pred_fallthru
      _
    // Predicated region
    $region6: #{vector_decoder_pallas.1} parent=1 // pred_check
      _
    $region7: #{vector_decoder_pallas.1} parent=1 // pred_check_branch
      %18 = sbr.rel (0) target = $region9
    $region8: #{vector_decoder_pallas.1} parent=1 // pred_region
      _
    $region9: #{vector_decoder_pallas.1} parent=1 // pred_fallthru
      _
    // Predicated region
    $region10: #{vector_decoder_pallas.1} parent=1 // pred_check
      _
    $region11: #{vector_decoder_pallas.1} parent=1 // pred_check_branch
      %20 = sbr.rel (0) target = $region13
    $region12: #{vector_decoder_pallas.1} parent=1 // pred_region
      _
    $region13: #{vector_decoder_pallas.1} parent=1 // pred_fallthru
      _
    // Predicated region
    $region14: #{vector_decoder_pallas.1} parent=1 // pred_check
      _
    $region15: #{vector_decoder_pallas.1} parent=1 // pred_check_branch
      %22 = sbr.rel (0) target = $region17
    $region16: #{vector_decoder_pallas.1} parent=1 // pred_region
      _
    $region17: #{vector_decoder_pallas.1} parent=1 // pred_fallthru
      _
    // Predicated region
    $region18: #{vector_decoder_pallas.1} parent=1 // pred_check
      _
    $region19: #{vector_decoder_pallas.1} parent=1 // pred_check_branch
      %24 = sbr.rel (0) target = $region21
    $region20: #{vector_decoder_pallas.1} parent=1 // pred_region
      _
    $region21: #{vector_decoder_pallas.1} parent=1 // pred_fallthru
      _
    // Predicated region
    $region22: #{vector_decoder_pallas.1} parent=1 // pred_check
      _
    $region23: #{vector_decoder_pallas.1} parent=1 // pred_check_branch
      %26 = sbr.rel (0) target = $region25
    $region24: #{vector_decoder_pallas.1} parent=1 // pred_region
      _
    $region25: #{vector_decoder_pallas.1} parent=1 // pred_fallthru
      _
    // Predicated region
    $region26: #{vector_decoder_pallas.1} parent=1 // pred_check
      _
    $region27: #{vector_decoder_pallas.1} parent=1 // pred_check_branch
      %28 = sbr.rel (0) target = $region29
    $region28: #{vector_decoder_pallas.1} parent=1 // pred_region
      _
    $region29: #{vector_decoder_pallas.1} parent=1 // pred_fallthru
      _
    // Predicated region
    $region30: #{vector_decoder_pallas.1} parent=1 // pred_check
      _
    $region31: #{vector_decoder_pallas.1} parent=1 // pred_check_branch
      %30 = sbr.rel (0) target = $region33
    $region32: #{vector_decoder_pallas.1} parent=1 // pred_region
      _
    $region33: #{vector_decoder_pallas.1} parent=1 // pred_fallthru
      _
    // Predicated region
    $region34: #{vector_decoder_pallas.1} parent=1 // pred_check
      _
    $region35: #{vector_decoder_pallas.1} parent=1 // pred_check_branch
      %32 = sbr.rel (0) target = $region37
    $region36: #{vector_decoder_pallas.1} parent=1 // pred_region
      _
    $region37: #{vector_decoder_pallas.1} parent=1 // pred_fallthru
      _
    %v34 = vld [vmem:[%s0] sm:$0xf]
    %v35 = vld [vmem:[%s0 + $0x4] sm:$0xf]
    %v36 = vld [vmem:[%s2] sm:$0xf]
    %v37 = vld [vmem:[%s2 + $0x4] sm:$0xf]
    %v38 = vld [vmem:[%s1] sm:$0xf]
    %v39 = vld [vmem:[%s1 + $0x4] sm:$0xf]
    %v40 = vld [vmem:[%s3] sm:$0x3]
    %v43 = vunpack.c.l.b16 %v38
    %v44 = vunpack.c.l.b16 %v39
    %v45 = vpack.c.b16 %v44, %v43
    %vm46 = vcmask 31744
    %v48 = vsel %vm46, %v45, 0
    %vm50 = vcmask 1041408
    %v52 = vsel %vm50, %v40, 0
    %54 = vmatprep.subr.bf16.mxu0 0
    %55 = vmatpush1.bf16.msra.mxu0 %v52
    %56 = vmatprep.subr.bf16.mxu0 0
    %57 = vmatpush1.bf16.msra.mxu0 0
    %58 = vmatprep.subr.bf16.mxu0 0
    %59 = vmatpush1.bf16.msra.mxu0 0
    %60 = vmatprep.subr.bf16.mxu0 0
    %61 = vmatpush1.bf16.msra.mxu0 0
    %62 = vmatprep.subr.bf16.mxu0 0
    %63 = vmatpush1.bf16.msra.mxu0 0
    %64 = vmatprep.subr.bf16.mxu0 0
    %65 = vmatpush1.bf16.msra.mxu0 0
    %66 = vmatprep.subr.bf16.mxu0 0
    %67 = vmatpush1.bf16.msra.mxu0 0
    %68 = vmatprep.subr.bf16.mxu0 0
    %69 = vmatpush1.bf16.msra.mxu0 0
    %70 = vmatprep.subr.bf16.mxu0 0
    %71 = vmatpush1.bf16.msra.mxu0 0
    %72 = vmatprep.subr.bf16.mxu0 0
    %73 = vmatpush1.bf16.msra.mxu0 0
    %74 = vmatprep.subr.bf16.mxu0 0
    %75 = vmatpush1.bf16.msra.mxu0 0
    %76 = vmatprep.subr.bf16.mxu0 0
    %77 = vmatpush1.bf16.msra.mxu0 0
    %78 = vmatprep.subr.bf16.mxu0 0
    %79 = vmatpush1.bf16.msra.mxu0 0
    %80 = vmatprep.subr.bf16.mxu0 0
    %81 = vmatpush1.bf16.msra.mxu0 0
    %82 = vmatprep.subr.bf16.mxu0 0
    %83 = vmatpush1.bf16.msra.mxu0 0
    %84 = vmatprep.subr.bf16.mxu0 0
    %85 = vmatpush1.bf16.msra.mxu0 0
    %86 = vmatprep.mubr.bf16.mxu0 0
    %87 = vmatmul.mubr.bf16.gmra.mrb[0].mxu0 %v48
    %v88 = vpop.f32.mrb[0].mxu0
    %v89 = vadd.f32 0.0, %v88
    %v90 = vpop.f32.mrb[0].mxu0
    %v91 = vpop.f32.mrb[0].mxu0
    %v92 = vadd.f32 0.0, %v91
    %v93 = vpop.f32.mrb[0].mxu0
    %94 = vdwg.mxu0
    %v97 = vunpack.c.l.b16 %v34
    %v98 = vunpack.c.l.b16 %v35
    %v99 = vpack.c.b16 %v98, %v97
    %v102 = vunpack.c.l.b16 %v36
    %v103 = vunpack.c.l.b16 %v37
    %v104 = vpack.c.b16 %v103, %v102
    %vm106 = vcmask 130048
    %v108 = vsel %vm106, %v99, 0
    %110 = vmatprep.subr.bf16.mxu0 0
    %111 = vmatpush1.bf16.msra.mxu0 %v104
    %112 = vmatprep.subr.bf16.mxu0 0
    %113 = vmatpush1.bf16.msra.mxu0 0
    %114 = vmatprep.subr.bf16.mxu0 0
    %115 = vmatpush1.bf16.msra.mxu0 0
    %116 = vmatprep.subr.bf16.mxu0 0
    %117 = vmatpush1.bf16.msra.mxu0 0
    %118 = vmatprep.subr.bf16.mxu0 0
    %119 = vmatpush1.bf16.msra.mxu0 0
    %120 = vmatprep.subr.bf16.mxu0 0
    %121 = vmatpush1.bf16.msra.mxu0 0
    %122 = vmatprep.subr.bf16.mxu0 0
    %123 = vmatpush1.bf16.msra.mxu0 0
    %124 = vmatprep.subr.bf16.mxu0 0
    %125 = vmatpush1.bf16.msra.mxu0 0
    %126 = vmatprep.subr.bf16.mxu0 0
    %127 = vmatpush1.bf16.msra.mxu0 0
    %128 = vmatprep.subr.bf16.mxu0 0
    %129 = vmatpush1.bf16.msra.mxu0 0
    %130 = vmatprep.subr.bf16.mxu0 0
    %131 = vmatpush1.bf16.msra.mxu0 0
    %132 = vmatprep.subr.bf16.mxu0 0
    %133 = vmatpush1.bf16.msra.mxu0 0
    %134 = vmatprep.subr.bf16.mxu0 0
    %135 = vmatpush1.bf16.msra.mxu0 0
    %136 = vmatprep.subr.bf16.mxu0 0
    %137 = vmatpush1.bf16.msra.mxu0 0
    %138 = vmatprep.subr.bf16.mxu0 0
    %139 = vmatpush1.bf16.msra.mxu0 0
    %140 = vmatprep.subr.bf16.mxu0 0
    %141 = vmatpush1.bf16.msra.mxu0 0
    %142 = vmatprep.mubr.bf16.mxu0 0
    %143 = vmatmul.mubr.bf16.gmra.mrb[0].mxu0 %v108
    %v144 = vpop.f32.mrb[0].mxu0
    %v145 = vadd.f32 %v89, %v144
    %v146 = vpop.f32.mrb[0].mxu0
    %v147 = vpop.f32.mrb[0].mxu0
    %v148 = vadd.f32 %v92, %v147
    %v149 = vpop.f32.mrb[0].mxu0
    %150 = vdwg.mxu0
    %v151 = vld [vmem:[%s4] sm:$0x1]
    %v153 = vlaneseq
    %v154 = vshrl.u32 %v153, 7
    %v155 = vsub.s32 0, %v154
    %v156 = vrot.slane %v151, %v155
    %v158 = vadd.f32 %v145, %v156
    %v159 = vadd.f32 %v148, %v156
    %v160 = vmax.f32 %v158, 0.0
    %v161 = vmax.f32 %v159, 0.0
    %v162 = vpack.c.bf16 %v161, %v160
    %v163 = vld [vmem:[%s5] sm:$0xf]
    %v164 = vld [vmem:[%s5 + $0x4] sm:$0xf]
    %v165 = vld [vmem:[%s5 + $0x8] sm:$0xf]
    %v166 = vld [vmem:[%s5 + $0xc] sm:$0xf]
    %v167 = vld [vmem:[%s5 + $0x10] sm:$0xf]
    %v168 = vld [vmem:[%s5 + $0x14] sm:$0xf]
    %v169 = vld [vmem:[%s5 + $0x18] sm:$0xf]
    %v170 = vld [vmem:[%s5 + $0x1c] sm:$0xf]
    %v171 = vld [vmem:[%s5 + $0x20] sm:$0xf]
    %v172 = vld [vmem:[%s5 + $0x24] sm:$0xf]
    %v173 = vld [vmem:[%s5 + $0x28] sm:$0xf]
    %v174 = vld [vmem:[%s5 + $0x2c] sm:$0xf]
    %v175 = vld [vmem:[%s5 + $0x30] sm:$0xf]
    %v176 = vld [vmem:[%s5 + $0x34] sm:$0xf]
    %v177 = vld [vmem:[%s5 + $0x38] sm:$0xf]
    %v178 = vld [vmem:[%s5 + $0x3c] sm:$0xf]
    %v179 = vld [vmem:[%s6] sm:$0x1]
    %v181 = vlaneseq
    %v182 = vshrl.u32 %v181, 7
    %v183 = vsub.s32 0, %v182
    %v184 = vrot.slane %v179, %v183
    %v202 = vunpack.c.l.b16 %v163
    %v203 = vunpack.c.l.b16 %v164
    %v204 = vunpack.c.l.b16 %v165
    %v205 = vunpack.c.l.b16 %v166
    %v206 = vunpack.c.l.b16 %v167
    %v207 = vunpack.c.l.b16 %v168
    %v208 = vunpack.c.l.b16 %v169
    %v209 = vunpack.c.l.b16 %v170
    %v210 = vunpack.c.l.b16 %v171
    %v211 = vunpack.c.l.b16 %v172
    %v212 = vunpack.c.l.b16 %v173
    %v213 = vunpack.c.l.b16 %v174
    %v214 = vunpack.c.l.b16 %v175
    %v215 = vunpack.c.l.b16 %v176
    %v216 = vunpack.c.l.b16 %v177
    %v217 = vunpack.c.l.b16 %v178
    %v218 = vpack.c.b16 %v203, %v202
    %v219 = vpack.c.b16 %v205, %v204
    %v220 = vpack.c.b16 %v207, %v206
    %v221 = vpack.c.b16 %v209, %v208
    %v222 = vpack.c.b16 %v211, %v210
    %v223 = vpack.c.b16 %v213, %v212
    %v224 = vpack.c.b16 %v215, %v214
    %v225 = vpack.c.b16 %v217, %v216
    %234 = vmatprep.subr.bf16.mxu0 0
    %235 = vmatpush1.bf16.msra.mxu0 %v218
    %236 = vmatprep.subr.bf16.mxu0 0
    %237 = vmatpush1.bf16.msra.mxu0 %v219
    %238 = vmatprep.subr.bf16.mxu0 0
    %239 = vmatpush1.bf16.msra.mxu0 %v220
    %240 = vmatprep.subr.bf16.mxu0 0
    %241 = vmatpush1.bf16.msra.mxu0 %v221
    %242 = vmatprep.subr.bf16.mxu0 0
    %243 = vmatpush1.bf16.msra.mxu0 %v222
    %244 = vmatprep.subr.bf16.mxu0 0
    %245 = vmatpush1.bf16.msra.mxu0 %v223
    %246 = vmatprep.subr.bf16.mxu0 0
    %247 = vmatpush1.bf16.msra.mxu0 %v224
    %248 = vmatprep.subr.bf16.mxu0 0
    %249 = vmatpush1.bf16.msra.mxu0 %v225
    %250 = vmatprep.subr.bf16.mxu0 0
    %251 = vmatpush1.bf16.msra.mxu0 0
    %252 = vmatprep.subr.bf16.mxu0 0
    %253 = vmatpush1.bf16.msra.mxu0 0
    %254 = vmatprep.subr.bf16.mxu0 0
    %255 = vmatpush1.bf16.msra.mxu0 0
    %256 = vmatprep.subr.bf16.mxu0 0
    %257 = vmatpush1.bf16.msra.mxu0 0
    %258 = vmatprep.subr.bf16.mxu0 0
    %259 = vmatpush1.bf16.msra.mxu0 0
    %260 = vmatprep.subr.bf16.mxu0 0
    %261 = vmatpush1.bf16.msra.mxu0 0
    %262 = vmatprep.subr.bf16.mxu0 0
    %263 = vmatpush1.bf16.msra.mxu0 0
    %264 = vmatprep.subr.bf16.mxu0 0
    %265 = vmatpush1.bf16.msra.mxu0 0
    %266 = vmatprep.mubr.bf16.mxu0 0
    %267 = vmatmul.mubr.bf16.gmra.mrb[0].mxu0 %v162
    %v268 = vpop.f32.mrb[0].mxu0
    %v269 = vadd.f32 %v184, %v268
    %v270 = vpop.f32.mrb[0].mxu0
    %v271 = vpop.f32.mrb[0].mxu0
    %v272 = vadd.f32 %v184, %v271
    %v273 = vpop.f32.mrb[0].mxu0
    %274 = vdwg.mxu0
    %v275 = vmax.f32 %v269, 0.0
    %v276 = vmax.f32 %v272, 0.0
    %v277 = vpack.c.bf16 %v276, %v275
    %v278 = vld [vmem:[%s7] sm:$0xf]
    %v279 = vld [vmem:[%s7 + $0x4] sm:$0xf]
    %v280 = vld [vmem:[%s7 + $0x8] sm:$0xf]
    %v281 = vld [vmem:[%s7 + $0xc] sm:$0xf]
    %v282 = vld [vmem:[%s7 + $0x10] sm:$0xf]
    %v283 = vld [vmem:[%s7 + $0x14] sm:$0xf]
    %v284 = vld [vmem:[%s7 + $0x18] sm:$0xf]
    %v285 = vld [vmem:[%s7 + $0x1c] sm:$0xf]
    %v286 = vld [vmem:[%s7 + $0x20] sm:$0xf]
    %v287 = vld [vmem:[%s7 + $0x24] sm:$0xf]
    %v288 = vld [vmem:[%s7 + $0x28] sm:$0xf]
    %v289 = vld [vmem:[%s7 + $0x2c] sm:$0xf]
    %v290 = vld [vmem:[%s7 + $0x30] sm:$0xf]
    %v291 = vld [vmem:[%s7 + $0x34] sm:$0xf]
    %v292 = vld [vmem:[%s7 + $0x38] sm:$0xf]
    %v293 = vld [vmem:[%s7 + $0x3c] sm:$0xf]
    %v294 = vld [vmem:[%s8] sm:$0x1]
    %v296 = vlaneseq
    %v297 = vshrl.u32 %v296, 7
    %v298 = vsub.s32 0, %v297
    %v299 = vrot.slane %v294, %v298
    %v317 = vunpack.c.l.b16 %v278
    %v318 = vunpack.c.l.b16 %v279
    %v319 = vunpack.c.l.b16 %v280
    %v320 = vunpack.c.l.b16 %v281
    %v321 = vunpack.c.l.b16 %v282
    %v322 = vunpack.c.l.b16 %v283
    %v323 = vunpack.c.l.b16 %v284
    %v324 = vunpack.c.l.b16 %v285
    %v325 = vunpack.c.l.b16 %v286
    %v326 = vunpack.c.l.b16 %v287
    %v327 = vunpack.c.l.b16 %v288
    %v328 = vunpack.c.l.b16 %v289
    %v329 = vunpack.c.l.b16 %v290
    %v330 = vunpack.c.l.b16 %v291
    %v331 = vunpack.c.l.b16 %v292
    %v332 = vunpack.c.l.b16 %v293
    %v333 = vpack.c.b16 %v318, %v317
    %v334 = vpack.c.b16 %v320, %v319
    %v335 = vpack.c.b16 %v322, %v321
    %v336 = vpack.c.b16 %v324, %v323
    %v337 = vpack.c.b16 %v326, %v325
    %v338 = vpack.c.b16 %v328, %v327
    %v339 = vpack.c.b16 %v330, %v329
    %v340 = vpack.c.b16 %v332, %v331
    %349 = vmatprep.subr.bf16.mxu0 0
    %350 = vmatpush1.bf16.msra.mxu0 %v333
    %351 = vmatprep.subr.bf16.mxu0 0
    %352 = vmatpush1.bf16.msra.mxu0 %v334
    %353 = vmatprep.subr.bf16.mxu0 0
    %354 = vmatpush1.bf16.msra.mxu0 %v335
    %355 = vmatprep.subr.bf16.mxu0 0
    %356 = vmatpush1.bf16.msra.mxu0 %v336
    %357 = vmatprep.subr.bf16.mxu0 0
    %358 = vmatpush1.bf16.msra.mxu0 %v337
    %359 = vmatprep.subr.bf16.mxu0 0
    %360 = vmatpush1.bf16.msra.mxu0 %v338
    %361 = vmatprep.subr.bf16.mxu0 0
    %362 = vmatpush1.bf16.msra.mxu0 %v339
    %363 = vmatprep.subr.bf16.mxu0 0
    %364 = vmatpush1.bf16.msra.mxu0 %v340
    %365 = vmatprep.subr.bf16.mxu0 0
    %366 = vmatpush1.bf16.msra.mxu0 0
    %367 = vmatprep.subr.bf16.mxu0 0
    %368 = vmatpush1.bf16.msra.mxu0 0
    %369 = vmatprep.subr.bf16.mxu0 0
    %370 = vmatpush1.bf16.msra.mxu0 0
    %371 = vmatprep.subr.bf16.mxu0 0
    %372 = vmatpush1.bf16.msra.mxu0 0
    %373 = vmatprep.subr.bf16.mxu0 0
    %374 = vmatpush1.bf16.msra.mxu0 0
    %375 = vmatprep.subr.bf16.mxu0 0
    %376 = vmatpush1.bf16.msra.mxu0 0
    %377 = vmatprep.subr.bf16.mxu0 0
    %378 = vmatpush1.bf16.msra.mxu0 0
    %379 = vmatprep.subr.bf16.mxu0 0
    %380 = vmatpush1.bf16.msra.mxu0 0
    %381 = vmatprep.mubr.bf16.mxu0 0
    %382 = vmatmul.mubr.bf16.gmra.mrb[0].mxu0 %v277
    %v383 = vpop.f32.mrb[0].mxu0
    %v384 = vadd.f32 %v299, %v383
    %v385 = vpop.f32.mrb[0].mxu0
    %v386 = vpop.f32.mrb[0].mxu0
    %v387 = vadd.f32 %v299, %v386
    %v388 = vpop.f32.mrb[0].mxu0
    %389 = vdwg.mxu0
    %390 = vst.msk [vmem:[#allocation2] sm:$0xff] %vm106, %v384
    %391 = vst.msk [vmem:[#allocation2 + $0x8] sm:$0xff] %vm106, %v387
    // Predicated region
    $region38: #{vector_decoder_pallas.1} parent=1 // pred_check
      _
    $region39: #{vector_decoder_pallas.1} parent=1 // pred_check_branch
      %393 = sbr.rel (0) target = $region41
    $region40: #{vector_decoder_pallas.1} parent=1 // pred_region
      %s395 = ssub.s32 256, 256
      %396 = vsyncadd [#allocation3], %s395
      %s397 = sshll.u32 [#allocation2], 4
      %s398 = int_to_ptr.vmem [resolvable:$true] %s397
      %403 = dma.vmem_to_hbm [thread:$0]  %s398, 256, %s9, [#allocation3], 128, 128, 8
    $region41: #{vector_decoder_pallas.1} parent=1 // pred_fallthru
      _
    // Predicated region
    $region42: #{vector_decoder_pallas.1} parent=1 // pred_check
      _
    $region43: #{vector_decoder_pallas.1} parent=1 // pred_check_branch
      %405 = sbr.rel (0) target = $region45
    $region44: #{vector_decoder_pallas.1} parent=1 // pred_region
      %406 = dma.done [#allocation3], 256
    $region45: #{vector_decoder_pallas.1} parent=1 // pred_fallthru
      _
    %407 = vsyncpa [#allocation3], 1

</llo_original>
